<compile_context>
chip_gen: v6e
topology: v6e:2x2x1
jax: 0.10.0
libtpu: 0.0.40
codegen_flags: <defaults>
</compile_context>

<pallas_src>
import math

import jax
import jax.numpy as jnp
from jax import lax
from jax.experimental import pallas as pl
from jax.experimental.pallas import tpu as pltpu


# ---------------------------------------------------------------------------
# Kernels
# ---------------------------------------------------------------------------

def _rope_kernel_full(pos_ref, inv_full_ref, cos_ref, sin_ref):
    """Full-width path (used whenever half = dim//2 is NOT a multiple of 128).

    pos_ref:      (tn, 1)  f32 positions column
    inv_full_ref: (1, dim) f32 == concat([inv_freq, inv_freq])  (pre-duplicated
                  in the wrapper -> no in-kernel lane concat)
    cos_ref/sin_ref: (tn, dim) in the output dtype.
    """
    freqs = pos_ref[...] * inv_full_ref[...]             # (tn, dim) f32 outer product
    # TODO(synk): when VALU-bound (bf16 outputs / v5e), a fused sincos (shared
    # range reduction) and 2-rows-per-vreg trig packing would further cut the
    # polynomial work; plain cos/sin kept for robustness.
    cos_ref[...] = jnp.cos(freqs).astype(cos_ref.dtype)
    sin_ref[...] = jnp.sin(freqs).astype(sin_ref.dtype)


def _rope_kernel_half(pos_ref, inv_ref, cos_ref, sin_ref):
    """Half-width-trig path, used only when half % 128 == 0 (dim >= 256), where
    trig on (tn, half) genuinely uses half the vregs; the cast happens on the
    half-width tile and the *result* is duplicated across lanes."""
    freqs = pos_ref[...] * inv_ref[...]                   # (tn, half) f32
    c = jnp.cos(freqs).astype(cos_ref.dtype)
    s = jnp.sin(freqs).astype(sin_ref.dtype)
    cos_ref[...] = jnp.concatenate([c, c], axis=-1)
    sin_ref[...] = jnp.concatenate([s, s], axis=-1)


def _rope_kernel_packed(pos_ref, inv_ref, cos_ref, sin_ref):
    """Lane-dense packed path: `pack` logical rows per output row, so every
    vector store is an unmasked full-128-lane store.

    pos_ref: (tr, pack)     f32 (row-major packing of positions)
    inv_ref: (1, pack*dim)  f32 == tile(concat([inv, inv]), pack)
    cos_ref/sin_ref: (tr, pack*dim) in the output dtype, pack*dim % 128 == 0.
    """
    pos = pos_ref[...]                                    # (tr, pack)
    inv = inv_ref[...]                                    # (1, width)
    tr, pack = pos.shape
    width = inv.shape[1]
    dim = width // pack

    # Expand positions across lanes: lanes [p*dim, (p+1)*dim) take pos[:, p].
    # Ascending overwrites with `lane >= p*dim` leave exactly that mapping;
    # pure VPU compares/selects (exact, no MXU, no reshapes).
    lane = lax.broadcasted_iota(jnp.int32, (1, width), 1)
    pos_full = jnp.broadcast_to(pos[:, 0:1], (tr, width))
    for p in range(1, pack):                              # unrolled at trace time
        pos_full = jnp.where(lane >= p * dim, pos[:, p:p + 1], pos_full)

    freqs = pos_full * inv                                # (tr, width) f32
    # TODO(synk): half-width trig per dim-chunk + XLU lane rolls would halve
    # the polynomial work on this path; full-width trig kept for robustness.
    cos_ref[...] = jnp.cos(freqs).astype(cos_ref.dtype)
    sin_ref[...] = jnp.sin(freqs).astype(sin_ref.dtype)


# ---------------------------------------------------------------------------
# Tiling / wrapper
# ---------------------------------------------------------------------------

_VMEM_LIMIT_BYTES = 32 * 1024 * 1024   # within physical VMEM on v5e/v6e/v7x


def _device_kind():
    try:
        return jax.devices()[0].device_kind.lower()
    except Exception:  # CPU emulation / no devices
        return ""


def _pick_row_tile(rows, width, out_bytes):
    """Generation- and dtype-aware row tile, clamped to a safe VMEM budget."""
    kind = _device_kind()
    is_v7 = "v7" in kind
    is_v5e = ("v5e" in kind) or ("v5 lite" in kind) or ("v5litepod" in kind)

    # Bigger tiles where HBM is faster / outputs are narrower: the ~0.35us
    # per-step pipeline overhead is the dominant loss term for this kernel.
    if is_v7:
        tile = 4096 if out_bytes <= 2 else 2048
    else:  # v6e / v5e / unknown
        tile = 2048 if out_bytes <= 2 else 1024

    # VMEM per row: 2 outputs x 2 pipeline buffers x width x out_bytes, plus
    # the lane-padded positions block ((tn,1)->(tn,128) f32, double-buffered).
    per_row = 4 * width * out_bytes + 2 * 128 * 4
    budget = (14 if is_v5e else 24) * 1024 * 1024   # below scoped-VMEM defaults
    max_rows = max((budget // per_row) // 8 * 8, 8)
    tile = min(tile, max_rows)

    # Don't leave a TensorCore idle on multi-core parts (v7x has 2 TCs):
    # keep at least ~2 grid steps per core when there is enough work.
    target_steps = 2 * (2 if is_v7 else 1)
    if rows >= target_steps * 512:
        while tile >= 512 and pl.cdiv(rows, tile) < target_steps:
            tile //= 2

    if tile >= rows:
        return rows                       # single block == full array (always legal)
    return max((tile // 8) * 8, 8)        # partial blocks need sublane-dim % 8 == 0


def llama_rotary_embedding(x, position_ids, inv_freq, *, scaling_factor=1.0,
                           row_tile=None):
    """Pallas implementation of LlamaRotaryEmbedding.forward.

    x:            only its dtype matters (as in the PyTorch module).
    position_ids: (B, S) integer positions.
    inv_freq:     (dim//2,) float32 buffer.
    Returns (cos, sin), each (B, S, dim) with dtype == x.dtype.
    """
    out_dtype = x.dtype
    out_bytes = jnp.dtype(out_dtype).itemsize
    B, S = position_ids.shape
    half = int(inv_freq.shape[0])
    dim = 2 * half
    N = B * S

    # The base-class forward ignores scaling_factor (it only affects the cached
    # buffers in __init__); kept (default 1.0 = no-op) so a linear-scaling
    # variant can reuse this wrapper.
    pos_flat = (position_ids.astype(jnp.float32) / scaling_factor).reshape(N)
    inv_f32 = inv_freq.astype(jnp.float32)
    inv_full = jnp.concatenate([inv_f32, inv_f32])        # (dim,)

    compiler_params = pltpu.CompilerParams(
        dimension_semantics=("parallel",),                # shard grid across TCs (v7x)
        vmem_limit_bytes=_VMEM_LIMIT_BYTES,
    )

    def _cost(n_rows, width):
        # Purely bandwidth-bound hint for XLA's scheduler.
        return pl.CostEstimate(
            flops=int(n_rows) * int(width),               # pos * inv multiplies
            transcendentals=2 * int(n_rows) * int(width), # cos + sin
            bytes_accessed=2 * int(n_rows) * int(width) * out_bytes
                           + int(n_rows) * 4 + int(width) * 4,
        )

    # ---------------- lane-dense packed path ----------------
    # pack * dim is a multiple of 128 -> every output store is an unmasked
    # full-lane store.  Cap the unroll so pathological dims fall back to the
    # (correct, masked-store) unpacked path.
    pack = 128 // math.gcd(dim, 128)
    if pack > 1 and pack <= 16:
        rows = pl.cdiv(N, pack)
        n_pad = rows * pack
        pos_flat_p = pos_flat if n_pad == N else jnp.pad(pos_flat, (0, n_pad - N))
        width = pack * dim
        pos2d = pos_flat_p.reshape(rows, pack)
        inv_row = jnp.tile(inv_full, pack).reshape(1, width)

        tr = row_tile if row_tile is not None else _pick_row_tile(rows, width, out_bytes)
        tr = min(tr, rows)
        if tr < rows:
            tr = max((tr // 8) * 8, 8)
        grid = (pl.cdiv(rows, tr),)

        cos2d, sin2d = pl.pallas_call(
            _rope_kernel_packed,
            out_shape=(jax.ShapeDtypeStruct((rows, width), out_dtype),
                       jax.ShapeDtypeStruct((rows, width), out_dtype)),
            grid_spec=pltpu.PrefetchScalarGridSpec(
                num_scalar_prefetch=0,
                grid=grid,
                in_specs=[
                    pl.BlockSpec((tr, pack), lambda i: (i, 0)),    # packed positions
                    pl.BlockSpec((1, width), lambda i: (0, 0)),    # tiled inv (shared)
                ],
                out_specs=[
                    pl.BlockSpec((tr, width), lambda i: (i, 0)),
                    pl.BlockSpec((tr, width), lambda i: (i, 0)),
                ],
            ),
            compiler_params=compiler_params,
            cost_estimate=_cost(rows, width),
        )(pos2d, inv_row)
        # Row-major: (rows, pack*dim) has the same element order as (n_pad, dim).
        cos = cos2d.reshape(n_pad, dim)[:N].reshape(B, S, dim)
        sin = sin2d.reshape(n_pad, dim)[:N].reshape(B, S, dim)
        return cos, sin

    # ---------------- unpacked path (dim a multiple of 128, or no clean packing) ----
    pos_col = pos_flat.reshape(N, 1)
    tn = row_tile if row_tile is not None else _pick_row_tile(N, dim, out_bytes)
    tn = min(tn, N)
    if tn < N:
        tn = max((tn // 8) * 8, 8)
    grid = (pl.cdiv(N, tn),)

    use_half = (half % 128 == 0)      # half-width trig only where it saves vregs
    if use_half:
        kernel = _rope_kernel_half
        inv_arg = inv_f32.reshape(1, half)
        inv_spec = pl.BlockSpec((1, half), lambda i: (0, 0))
    else:
        kernel = _rope_kernel_full
        inv_arg = inv_full.reshape(1, dim)                 # pre-duplicated in wrapper
        inv_spec = pl.BlockSpec((1, dim), lambda i: (0, 0))

    cos_flat, sin_flat = pl.pallas_call(
        kernel,
        out_shape=(jax.ShapeDtypeStruct((N, dim), out_dtype),
                   jax.ShapeDtypeStruct((N, dim), out_dtype)),
        grid_spec=pltpu.PrefetchScalarGridSpec(
            num_scalar_prefetch=0,
            grid=grid,
            in_specs=[
                pl.BlockSpec((tn, 1), lambda i: (i, 0)),           # positions column
                inv_spec,                                          # inv row (shared)
            ],
            out_specs=[
                pl.BlockSpec((tn, dim), lambda i: (i, 0)),
                pl.BlockSpec((tn, dim), lambda i: (i, 0)),
            ],
        ),
        compiler_params=compiler_params,
        cost_estimate=_cost(N, dim),
    )(pos_col, inv_arg)
    return cos_flat.reshape(B, S, dim), sin_flat.reshape(B, S, dim)


# ---------------------------------------------------------------------------
# Init helper + reference + self-test
# ---------------------------------------------------------------------------

def make_inv_freq(dim, base=10000.0):
    # Deterministic parameter init, mirroring the module's __init__.
    return 1.0 / (base ** (jnp.arange(0, dim, 2, dtype=jnp.float32) / dim))


def _reference(position_ids, inv_freq, out_dtype):
    freqs = (position_ids.astype(jnp.float32)[..., None]
             * inv_freq.astype(jnp.float32)[None, None, :])
    emb = jnp.concatenate([freqs, freqs], axis=-1)
    return jnp.cos(emb).astype(out_dtype), jnp.sin(emb).astype(out_dtype)


if __name__ == "__main__":
    key = jax.random.PRNGKey(0)
    k_x, k_pos = jax.random.split(key)

    max_position_embeddings = 2048
    position_ids = jax.random.randint(k_pos, (2, 8), 0, max_position_embeddings,
                                      dtype=jnp.int32)

    def check(dim, out_dtype, pos_ids, atol, rtol):
        x = jax.random.normal(k_x, pos_ids.shape + (dim,),
                              dtype=jnp.float32).astype(out_dtype)
        inv_freq = make_inv_freq(dim)
        cos, sin = llama_rotary_embedding(x, pos_ids, inv_freq)
        jax.block_until_ready((cos, sin))
        cos_ref, sin_ref = _reference(pos_ids, inv_freq, out_dtype)
        assert cos.shape == pos_ids.shape + (dim,) and sin.shape == cos.shape
        assert cos.dtype == out_dtype and sin.dtype == out_dtype
        assert jnp.allclose(cos.astype(jnp.float32), cos_ref.astype(jnp.float32),
                            atol=atol, rtol=rtol), f"cos mismatch dim={dim}"
        assert jnp.allclose(sin.astype(jnp.float32), sin_ref.astype(jnp.float32),
                            atol=atol, rtol=rtol), f"sin mismatch dim={dim}"

    # dim=32  -> lane-dense packed path (pack=4, width=128).
    check(32, jnp.float32, position_ids, atol=1e-5, rtol=1e-5)
    # dim=128 -> unpacked full-width path (no in-kernel concat).
    check(128, jnp.float32, position_ids, atol=1e-5, rtol=1e-5)
    # dim=256 -> genuine half-width trig + result duplication path.
    check(256, jnp.float32, position_ids, atol=1e-5, rtol=1e-5)
    # dim=64 with ragged N (pack=2 + pad/slice) and 16-bit outputs.
    pos_odd = jax.random.randint(k_pos, (1, 7), 0, max_position_embeddings,
                                 dtype=jnp.int32)
    check(64, jnp.bfloat16, pos_odd, atol=2e-2, rtol=0.0)

    print("KERNEL_OK")
</pallas_src>

<mosaic_0001>
module attributes {stable_mosaic.version = 11 : i64} {
  func.func @_rope_kernel_packed(%arg0: i32, %arg1: memref<4x4xf32, #tpu.memory_space<vmem>>, %arg2: memref<1x128xf32, #tpu.memory_space<vmem>>, %arg3: memref<4x128xf32, #tpu.memory_space<vmem>>, %arg4: memref<4x128xf32, #tpu.memory_space<vmem>>) attributes {dimension_semantics = [#tpu.dimension_semantics<parallel>], iteration_bounds = array<i64: 1>, scalar_prefetch = 0 : i64, scratch_operands = 0 : i64, tpu.core_type = #tpu.core_type<tc>, window_params = [{transform_indices = @transform_0, window_bounds = array<i64: 4, 4>}, {pipeline_mode = #tpu.pipeline_mode<synchronous>, transform_indices = @transform_1, window_bounds = array<i64: 1, 128>}, {transform_indices = @transform_2, window_bounds = array<i64: 4, 128>}, {transform_indices = @transform_3, window_bounds = array<i64: 4, 128>}]} {
    %c0 = arith.constant 0 : index
    %c0_0 = arith.constant 0 : index
    %0 = vector.load %arg1[%c0, %c0_0] : memref<4x4xf32, #tpu.memory_space<vmem>>, vector<4x4xf32>
    %c0_1 = arith.constant 0 : index
    %c0_2 = arith.constant 0 : index
    %1 = vector.load %arg2[%c0_1, %c0_2] : memref<1x128xf32, #tpu.memory_space<vmem>>, vector<1x128xf32>
    %2 = tpu.iota {dimensions = array<i32: 1>} : vector<1x128xi32>
    %3 = vector.extract_strided_slice %0 {offsets = [0, 0], sizes = [4, 1], strides = [1, 1]} : vector<4x4xf32> to vector<4x1xf32>
    %4 = vector.shape_cast %3 : vector<4x1xf32> to vector<4x1xf32>
    %5 = vector.broadcast %4 : vector<4x1xf32> to vector<4x128xf32>
    %c32_i32 = arith.constant 32 : i32
    %6 = vector.broadcast %c32_i32 : i32 to vector<1x128xi32>
    %7 = arith.cmpi sge, %2, %6 : vector<1x128xi32>
    %8 = vector.extract_strided_slice %0 {offsets = [0, 1], sizes = [4, 1], strides = [1, 1]} : vector<4x4xf32> to vector<4x1xf32>
    %9 = vector.shape_cast %7 : vector<1x128xi1> to vector<1x128xi1>
    %10 = vector.broadcast %9 : vector<1x128xi1> to vector<4x128xi1>
    %11 = vector.shape_cast %8 : vector<4x1xf32> to vector<4x1xf32>
    %12 = vector.broadcast %11 : vector<4x1xf32> to vector<4x128xf32>
    %13 = arith.select %10, %12, %5 : vector<4x128xi1>, vector<4x128xf32>
    %c64_i32 = arith.constant 64 : i32
    %14 = vector.broadcast %c64_i32 : i32 to vector<1x128xi32>
    %15 = arith.cmpi sge, %2, %14 : vector<1x128xi32>
    %16 = vector.extract_strided_slice %0 {offsets = [0, 2], sizes = [4, 1], strides = [1, 1]} : vector<4x4xf32> to vector<4x1xf32>
    %17 = vector.shape_cast %15 : vector<1x128xi1> to vector<1x128xi1>
    %18 = vector.broadcast %17 : vector<1x128xi1> to vector<4x128xi1>
    %19 = vector.shape_cast %16 : vector<4x1xf32> to vector<4x1xf32>
    %20 = vector.broadcast %19 : vector<4x1xf32> to vector<4x128xf32>
    %21 = arith.select %18, %20, %13 : vector<4x128xi1>, vector<4x128xf32>
    %c96_i32 = arith.constant 96 : i32
    %22 = vector.broadcast %c96_i32 : i32 to vector<1x128xi32>
    %23 = arith.cmpi sge, %2, %22 : vector<1x128xi32>
    %24 = vector.extract_strided_slice %0 {offsets = [0, 3], sizes = [4, 1], strides = [1, 1]} : vector<4x4xf32> to vector<4x1xf32>
    %25 = vector.shape_cast %23 : vector<1x128xi1> to vector<1x128xi1>
    %26 = vector.broadcast %25 : vector<1x128xi1> to vector<4x128xi1>
    %27 = vector.shape_cast %24 : vector<4x1xf32> to vector<4x1xf32>
    %28 = vector.broadcast %27 : vector<4x1xf32> to vector<4x128xf32>
    %29 = arith.select %26, %28, %21 : vector<4x128xi1>, vector<4x128xf32>
    %30 = vector.broadcast %1 : vector<1x128xf32> to vector<4x128xf32>
    %31 = arith.mulf %29, %30 : vector<4x128xf32>
    %32 = math.cos %31 : vector<4x128xf32>
    %c0_3 = arith.constant 0 : index
    %c0_4 = arith.constant 0 : index
    %33 = vector.load %arg3[%c0_3, %c0_4] : memref<4x128xf32, #tpu.memory_space<vmem>>, vector<4x128xf32>
    tpu.vector_store %arg3[%c0_3, %c0_4], %32 {strides = array<i32>} : memref<4x128xf32, #tpu.memory_space<vmem>>, vector<4x128xf32>,
    %34 = math.sin %31 : vector<4x128xf32>
    %c0_5 = arith.constant 0 : index
    %c0_6 = arith.constant 0 : index
    %35 = vector.load %arg4[%c0_5, %c0_6] : memref<4x128xf32, #tpu.memory_space<vmem>>, vector<4x128xf32>
    tpu.vector_store %arg4[%c0_5, %c0_6], %34 {strides = array<i32>} : memref<4x128xf32, #tpu.memory_space<vmem>>, vector<4x128xf32>,
    return
  }
  func.func @transform_0(%arg0: i32) -> (i32, i32) {
    %c0_i32 = arith.constant 0 : i32
    %c0_i32_0 = arith.constant 0 : i32
    return %arg0, %c0_i32 : i32, i32
  }
  func.func @transform_1(%arg0: i32) -> (i32, i32) {
    %c0_i32 = arith.constant 0 : i32
    %c0_i32_0 = arith.constant 0 : i32
    %c0_i32_1 = arith.constant 0 : i32
    return %c0_i32, %c0_i32_0 : i32, i32
  }
  func.func @transform_2(%arg0: i32) -> (i32, i32) {
    %c0_i32 = arith.constant 0 : i32
    %c0_i32_0 = arith.constant 0 : i32
    return %arg0, %c0_i32 : i32, i32
  }
  func.func @transform_3(%arg0: i32) -> (i32, i32) {
    %c0_i32 = arith.constant 0 : i32
    %c0_i32_0 = arith.constant 0 : i32
    return %arg0, %c0_i32 : i32, i32
  }
}

</mosaic_0001>

<llo_original>
// kernel: tpu_custom_call.1
$region0: #{tpu_custom_call.1}
  #allocation0 [shape = 'u32[]', space=smem, size = 0x4, offset = 0x4, fixed_abs, tag = 'smem constant byte address 0x4 - core index']
  #allocation1 [shape = 'u32[144,128]{1,0:T(1,128)}', space=vmem, size = 0x12000, scoped, tag = 'internal scratch']
  %s0 = inlined_call_operand.hbm [shape: f32[4,4], index: 0, kind: input, shape index: {}]
  %s1 = inlined_call_operand.vmem [shape: f32[1,128], index: 1, kind: input, shape index: {}]
  %s2 = inlined_call_operand.hbm [shape: f32[4,128], index: 2, kind: output, shape index: {0}]
  %s3 = inlined_call_operand.hbm [shape: f32[4,128], index: 3, kind: output, shape index: {1}]
  %4 = xla_tuple %s2, %s3
  %s5 = sld [smem:[#allocation0]]
  $region30: #{tpu_custom_call.1} parent=0
    _
  %s7 = ssub.s32 1, %s5
  %s8 = scalar_select 0, %s7, %s5
  $region1: #{tpu_custom_call.1} parent=0
    #allocation2 [shape = 'u8[2048]{0}', space=vmem, size = 0x800, scoped, tag = 'input window, operand 0, single buffered']
    #allocation3 [shape = 's32[1]{0}', space=sflag, size = 0x4, scoped, tag = 'scoped memory for tpu_custom_call.1']
    #allocation4 [shape = 's32[1]{0}', space=sflag, size = 0x4, scoped, tag = 'scoped memory for tpu_custom_call.1']
    #allocation5 [shape = 'u8[2048]{0}', space=vmem, size = 0x800, scoped, tag = 'output window, operand 0, single buffered']
    #allocation6 [shape = 'u8[2048]{0}', space=vmem, size = 0x800, scoped, tag = 'output window, operand 1, single buffered']
    #allocation7 [shape = 's32[1]{0}', space=sflag, size = 0x4, scoped, tag = 'scoped memory for tpu_custom_call.1']
    %9 = vsyncpa [#allocation3], 0
    %10 = vsyncpa [#allocation4], 0
    %11 = vsyncpa [#allocation7], 0
    // Predicated region
    $region2: #{tpu_custom_call.1} parent=1 // pred_check
      _
    $region3: #{tpu_custom_call.1} parent=1 // pred_check_branch
      %13 = sbr.rel (0) target = $region5
    $region4: #{tpu_custom_call.1} parent=1 // pred_region
      %s15 = ssub.s32 64, 64
      %16 = vsyncadd [#allocation3], %s15
      %s18 = sshll.u32 [#allocation2], 4
      %s19 = int_to_ptr.vmem [resolvable:$true] %s18
      %21 = dma.hbm_to_vmem [thread:$0]  %s0, 64, %s19, [#allocation3]
    $region5: #{tpu_custom_call.1} parent=1 // pred_fallthru
      _
    // Predicated region
    $region6: #{tpu_custom_call.1} parent=1 // pred_check
      _
    $region7: #{tpu_custom_call.1} parent=1 // pred_check_branch
      %23 = sbr.rel (0) target = $region9
    $region8: #{tpu_custom_call.1} parent=1 // pred_region
      _
    $region9: #{tpu_custom_call.1} parent=1 // pred_fallthru
      _
    // Predicated region
    $region10: #{tpu_custom_call.1} parent=1 // pred_check
      _
    $region11: #{tpu_custom_call.1} parent=1 // pred_check_branch
      %25 = sbr.rel (0) target = $region13
    $region12: #{tpu_custom_call.1} parent=1 // pred_region
      %26 = dma.done [#allocation3], 64
    $region13: #{tpu_custom_call.1} parent=1 // pred_fallthru
      _
    %v27 = vld [vmem:[#allocation2] sm:$0xf]
    %v28 = vld [vmem:[%s1] sm:$0x1]
    %v29 = vlaneseq
    %v30 = vand.u32 %v29, 127
    %32 = vset.pattern.permute.xlu0 0
    %33 = vperm.xlu0 %32, %v27
    %v34 = vpop.permute.xlu0 %33
    %vm36 = vcmp.ge.s32.totalorder %v30, 32
    %v37 = vsel %vm36, 1, 0
    %vm38 = vcmp.eq.s32.totalorder %v37, 1
    %39 = vset.pattern.permute.xlu0 1
    %40 = vperm.xlu0 %39, %v27
    %v41 = vpop.permute.xlu0 %40
    %v43 = vsel %vm38, %v41, %v34
    %vm44 = vcmp.ge.s32.totalorder %v30, 64
    %v45 = vsel %vm44, 1, 0
    %vm46 = vcmp.eq.s32.totalorder %v45, 1
    %47 = vset.pattern.permute.xlu0 2
    %48 = vperm.xlu0 %47, %v27
    %v49 = vpop.permute.xlu0 %48
    %v51 = vsel %vm46, %v49, %v43
    %vm52 = vcmp.ge.s32.totalorder %v30, 96
    %v53 = vsel %vm52, 1, 0
    %vm54 = vcmp.eq.s32.totalorder %v53, 1
    %55 = vset.pattern.permute.xlu0 3
    %56 = vperm.xlu0 %55, %v27
    %v57 = vpop.permute.xlu0 %56
    %v59 = vsel %vm54, %v57, %v51
    %v61 = vlaneseq
    %v62 = vshrl.u32 %v61, 7
    %v63 = vsub.s32 0, %v62
    %v64 = vrot.slane %v28, %v63
    %v66 = vmul.f32 %v59, %v64
    %v67 = vand.u32 2147483647, %v66
    %vm68 = vcmp.le.f32.partialorder %v67, 0.7853982
    %vm69 = vcmp.lt.s32.totalorder %v66, 0
    %v70 = vand.u32 %v66, 2139095040
    %v71 = vshrl.u32 %v70, 23
    %v72 = vsub.s32 %v71, 127
    %v73 = vand.u32 2147483647, %v66
    %v74 = vand.u32 %v73, 8388607
    %v75 = vor.u32 %v74, 8388608
    %v76 = vsub.s32 0, %v75
    %v77 = vadd.s32 %v72, 1
    %vm78 = vcmp.gt.s32.totalorder %v77, 0
    %v79 = vsel %vm78, %v77, 0
    %v80 = vshrl.u32 %v79, 5
    %v81 = vand.u32 %v79, 31
    %v82 = vsub.s32 32, %v81
    %v83 = vshrl.u32 683565275, %v82
    %v84 = vshll.u32 683565275, %v81
    %v85 = vshrl.u32 2475754826, %v82
    %v86 = vor.u32 %v84, %v85
    %v87 = vshll.u32 2475754826, %v81
    %v88 = vshrl.u32 2131351028, %v82
    %v89 = vor.u32 %v87, %v88
    %v90 = vshll.u32 2131351028, %v81
    %v91 = vshrl.u32 2102212464, %v82
    %v92 = vor.u32 %v90, %v91
    %v93 = vshll.u32 2102212464, %v81
    %v94 = vshrl.u32 920167782, %v82
    %v95 = vor.u32 %v93, %v94
    %v96 = vshll.u32 920167782, %v81
    %v97 = vshrl.u32 1326507024, %v82
    %v98 = vor.u32 %v96, %v97
    %vm99 = vcmp.lt.s32.totalorder %v80, 1
    %vm100 = vcmp.lt.s32.totalorder %v80, 2
    %vm101 = vcmp.lt.s32.totalorder %v80, 3
    %vm102 = vcmp.lt.s32.totalorder %v80, 4
    %v103 = vsel %vm99, %v83, %v86
    %v104 = vsel %vm102, %v92, 2102212464
    %v105 = vsel %vm101, %v89, %v104
    %v106 = vsel %vm100, %v103, %v105
    %v107 = vsel %vm99, %v86, %v89
    %v108 = vsel %vm102, %v95, 920167782
    %v109 = vsel %vm101, %v92, %v108
    %v110 = vsel %vm100, %v107, %v109
    %v111 = vsel %vm99, %v89, %v92
    %v112 = vsel %vm102, %v98, 1326507024
    %v113 = vsel %vm101, %v95, %v112
    %v114 = vsel %vm100, %v111, %v113
    %v115 = vshll.u32 %v75, 8
    %v116 = vmul.u32.u64.compose %v115, %v114
    %v117 = vextract.low.u32 %v116
    %v118 = vextract.high.u32 %v116
    %v119 = vmul.u32.u64.compose %v115, %v110
    %v120 = vextract.low.u32 %v119
    %v121 = vextract.high.u32 %v119
    %v122 = vmul.u32 %v115, %v106
    %v123 = vadd.s32 %v118, %v120
    %vm124 = vc.u32 %v118, %v120
    %v125 = vadd.s32 %v121, 1
    %v126 = vsel %vm124, %v125, %v121
    %v127 = vadd.s32 %v122, %v126
    %v128 = vadd.s32 %v127, 536870912
    %v129 = vshrl.u32 %v128, 30
    %v130 = vshll.u32 %v129, 30
    %v131 = vsub.s32 %v127, %v130
    %vm132 = vcmp.lt.s32.totalorder %v131, 0
    %v133 = vsub.s32 0, %v131
    %v134 = vsel %vm132, %v133, %v131
    %v135 = vclz %v134
    %v136 = vsub.s32 %v135, 2
    %vm137 = vcmp.gt.s32.totalorder 0, %v136
    %v138 = vsel %vm137, 0, %v136
    %v139 = vsub.s32 32, %v138
    %v140 = vshll.u32 %v131, %v138
    %v141 = vshrl.u32 %v123, %v139
    %v142 = vor.u32 %v140, %v141
    %v143 = vsub.s32 4294967266, %v138
    %v144 = vadd.s32 %v143, 127
    %v145 = vshll.u32 %v144, 23
    %v146 = vor.u32 4788187, %v145
    %v147 = vand.u32 2147483647, %v146
    %v149 = vcvt.s32.f32 %v142
    %v150 = vmul.f32 %v149, %v147
    %v151 = vxor.u32 %v150, 2147483648
    %v152 = vsel %vm69, %v151, %v150
    %v153 = vsub.s32 4, %v129
    %v154 = vsel %vm69, %v153, %v129
    %v155 = vsel %vm68, %v66, %v152
    %v156 = vsel %vm68, 0, %v154
    %v157 = vcosq.f32.pop %v155
    %v158 = vsinq.f32.pop %v155
    %vm159 = vweird.f32 %v66
    %v160 = vand.u32 %v156, 3
    %vm161 = vcmp.lt.s32.totalorder %v160, 2
    %vm162 = vcmp.eq.s32.totalorder %v160, 0
    %v163 = vxor.u32 %v158, 2147483648
    %v164 = vsel %vm162, %v157, %v163
    %vm165 = vcmp.eq.s32.totalorder %v160, 2
    %v166 = vxor.u32 %v157, 2147483648
    %v167 = vsel %vm165, %v166, %v158
    %v168 = vsel %vm161, %v164, %v167
    %v169 = vsel %vm159, nan, %v168
    %170 = vst [vmem:[#allocation5] sm:$0xf] %v169
    %v171 = vand.u32 2147483647, %v66
    %vm172 = vcmp.le.f32.partialorder %v171, 0.7853982
    %vm173 = vcmp.lt.s32.totalorder %v66, 0
    %v174 = vand.u32 %v66, 2139095040
    %v175 = vshrl.u32 %v174, 23
    %v176 = vsub.s32 %v175, 127
    %v177 = vand.u32 2147483647, %v66
    %v178 = vand.u32 %v177, 8388607
    %v179 = vor.u32 %v178, 8388608
    %v180 = vsub.s32 0, %v179
    %v181 = vadd.s32 %v176, 1
    %vm182 = vcmp.gt.s32.totalorder %v181, 0
    %v183 = vsel %vm182, %v181, 0
    %v184 = vshrl.u32 %v183, 5
    %v185 = vand.u32 %v183, 31
    %v186 = vsub.s32 32, %v185
    %v187 = vshrl.u32 683565275, %v186
    %v188 = vshll.u32 683565275, %v185
    %v189 = vshrl.u32 2475754826, %v186
    %v190 = vor.u32 %v188, %v189
    %v191 = vshll.u32 2475754826, %v185
    %v192 = vshrl.u32 2131351028, %v186
    %v193 = vor.u32 %v191, %v192
    %v194 = vshll.u32 2131351028, %v185
    %v195 = vshrl.u32 2102212464, %v186
    %v196 = vor.u32 %v194, %v195
    %v197 = vshll.u32 2102212464, %v185
    %v198 = vshrl.u32 920167782, %v186
    %v199 = vor.u32 %v197, %v198
    %v200 = vshll.u32 920167782, %v185
    %v201 = vshrl.u32 1326507024, %v186
    %v202 = vor.u32 %v200, %v201
    %vm203 = vcmp.lt.s32.totalorder %v184, 1
    %vm204 = vcmp.lt.s32.totalorder %v184, 2
    %vm205 = vcmp.lt.s32.totalorder %v184, 3
    %vm206 = vcmp.lt.s32.totalorder %v184, 4
    %v207 = vsel %vm203, %v187, %v190
    %v208 = vsel %vm206, %v196, 2102212464
    %v209 = vsel %vm205, %v193, %v208
    %v210 = vsel %vm204, %v207, %v209
    %v211 = vsel %vm203, %v190, %v193
    %v212 = vsel %vm206, %v199, 920167782
    %v213 = vsel %vm205, %v196, %v212
    %v214 = vsel %vm204, %v211, %v213
    %v215 = vsel %vm203, %v193, %v196
    %v216 = vsel %vm206, %v202, 1326507024
    %v217 = vsel %vm205, %v199, %v216
    %v218 = vsel %vm204, %v215, %v217
    %v219 = vshll.u32 %v179, 8
    %v220 = vmul.u32.u64.compose %v219, %v218
    %v221 = vextract.low.u32 %v220
    %v222 = vextract.high.u32 %v220
    %v223 = vmul.u32.u64.compose %v219, %v214
    %v224 = vextract.low.u32 %v223
    %v225 = vextract.high.u32 %v223
    %v226 = vmul.u32 %v219, %v210
    %v227 = vadd.s32 %v222, %v224
    %vm228 = vc.u32 %v222, %v224
    %v229 = vadd.s32 %v225, 1
    %v230 = vsel %vm228, %v229, %v225
    %v231 = vadd.s32 %v226, %v230
    %v232 = vadd.s32 %v231, 536870912
    %v233 = vshrl.u32 %v232, 30
    %v234 = vshll.u32 %v233, 30
    %v235 = vsub.s32 %v231, %v234
    %vm236 = vcmp.lt.s32.totalorder %v235, 0
    %v237 = vsub.s32 0, %v235
    %v238 = vsel %vm236, %v237, %v235
    %v239 = vclz %v238
    %v240 = vsub.s32 %v239, 2
    %vm241 = vcmp.gt.s32.totalorder 0, %v240
    %v242 = vsel %vm241, 0, %v240
    %v243 = vsub.s32 32, %v242
    %v244 = vshll.u32 %v235, %v242
    %v245 = vshrl.u32 %v227, %v243
    %v246 = vor.u32 %v244, %v245
    %v247 = vsub.s32 4294967266, %v242
    %v248 = vadd.s32 %v247, 127
    %v249 = vshll.u32 %v248, 23
    %v250 = vor.u32 4788187, %v249
    %v251 = vand.u32 2147483647, %v250
    %v253 = vcvt.s32.f32 %v246
    %v254 = vmul.f32 %v253, %v251
    %v255 = vxor.u32 %v254, 2147483648
    %v256 = vsel %vm173, %v255, %v254
    %v257 = vsub.s32 4, %v233
    %v258 = vsel %vm173, %v257, %v233
    %v259 = vsel %vm172, %v66, %v256
    %v260 = vsel %vm172, 0, %v258
    %v261 = vcosq.f32.pop %v259
    %v262 = vsinq.f32.pop %v259
    %vm263 = vweird.f32 %v66
    %v264 = vadd.s32 %v260, 3
    %v265 = vand.u32 %v264, 3
    %vm266 = vcmp.lt.s32.totalorder %v265, 2
    %vm267 = vcmp.eq.s32.totalorder %v265, 0
    %v268 = vxor.u32 %v262, 2147483648
    %v269 = vsel %vm267, %v261, %v268
    %vm270 = vcmp.eq.s32.totalorder %v265, 2
    %v271 = vxor.u32 %v261, 2147483648
    %v272 = vsel %vm270, %v271, %v262
    %v273 = vsel %vm266, %v269, %v272
    %v274 = vsel %vm263, nan, %v273
    %275 = vst [vmem:[#allocation6] sm:$0xf] %v274
    // Predicated region
    $region14: #{tpu_custom_call.1} parent=1 // pred_check
      _
    $region15: #{tpu_custom_call.1} parent=1 // pred_check_branch
      %277 = sbr.rel (0) target = $region17
    $region16: #{tpu_custom_call.1} parent=1 // pred_region
      %s279 = ssub.s32 64, 64
      %280 = vsyncadd [#allocation4], %s279
      %s282 = sshll.u32 [#allocation5], 4
      %s283 = int_to_ptr.vmem [resolvable:$true] %s282
      %285 = dma.vmem_to_hbm [thread:$0]  %s283, 64, %s2, [#allocation4]
    $region17: #{tpu_custom_call.1} parent=1 // pred_fallthru
      _
    // Predicated region
    $region18: #{tpu_custom_call.1} parent=1 // pred_check
      _
    $region19: #{tpu_custom_call.1} parent=1 // pred_check_branch
      %287 = sbr.rel (0) target = $region21
    $region20: #{tpu_custom_call.1} parent=1 // pred_region
      %s289 = ssub.s32 64, 64
      %290 = vsyncadd [#allocation7], %s289
      %s292 = sshll.u32 [#allocation6], 4
      %s293 = int_to_ptr.vmem [resolvable:$true] %s292
      %295 = dma.vmem_to_hbm [thread:$0]  %s293, 64, %s3, [#allocation7]
    $region21: #{tpu_custom_call.1} parent=1 // pred_fallthru
      _
    // Predicated region
    $region22: #{tpu_custom_call.1} parent=1 // pred_check
      _
    $region23: #{tpu_custom_call.1} parent=1 // pred_check_branch
      %297 = sbr.rel (0) target = $region25
    $region24: #{tpu_custom_call.1} parent=1 // pred_region
      %298 = dma.done [#allocation4], 64
    $region25: #{tpu_custom_call.1} parent=1 // pred_fallthru
      _
    // Predicated region
    $region26: #{tpu_custom_call.1} parent=1 // pred_check
      _
    $region27: #{tpu_custom_call.1} parent=1 // pred_check_branch
      %300 = sbr.rel (0) target = $region29
    $region28: #{tpu_custom_call.1} parent=1 // pred_region
      %301 = dma.done [#allocation7], 64
    $region29: #{tpu_custom_call.1} parent=1 // pred_fallthru
      _
    %302 = vsyncpa [#allocation3], 1
    %303 = vsyncpa [#allocation4], 1
    %304 = vsyncpa [#allocation7], 1

</llo_original>
